<compile_context>
chip_gen: v5e
topology: v5e:2x2
jax: 0.10.0
libtpu: 0.0.40
codegen_flags: <defaults>
</compile_context>

<pallas_src>
from functools import partial

import jax
import jax.numpy as jnp
from jax.experimental import pallas as pl
from jax.experimental.pallas import tpu as pltpu


def _round_up(x, m):
    return ((x + m - 1) // m) * m


def _pick_block(batch, block_b):
    """Return (batch tile, padded batch); avoids padding whenever possible."""
    if batch <= block_b:
        return batch, batch                       # one block covers the batch
    start = block_b - (block_b % 8)
    for cand in range(start, 0, -8):              # largest 8-multiple divisor
        if batch % cand == 0:
            return cand, batch
    # TODO(synk): ragged batch tail -> padding adds an extra HBM pass.
    return block_b, _round_up(batch, block_b)


def _coupling_kernel(x_ref, w1_ref, b1_ref, w2s_ref, w2t_ref, b2s_ref, b2t_ref,
                     z2_ref, ld_ref):
    """Affine coupling step for one batch tile (all refs in VMEM).

    x_ref  : (B_blk, D)  bf16  input rows
    z2_ref : (B_blk, Dh) bf16  transformed half only (identity half aliases x)
    ld_ref : (B_blk, 8)  f32   per-row logdet, broadcast over 8 lanes
    """
    Dh = x_ref.shape[1] // 2
    x1 = x_ref[:, :Dh]                        # bf16, identity half
    x2 = x_ref[:, Dh:]                        # bf16, transformed half

    # Conditioner MLP: bf16 MXU operands, f32 accumulation.
    h = jnp.tanh(
        jnp.dot(x1, w1_ref[...], preferred_element_type=jnp.float32)
        + b1_ref[...])                        # (B_blk, Hp) f32
    hb = h.astype(w2s_ref.dtype)              # bf16 for second-layer matmuls
    s = jnp.tanh(
        jnp.dot(hb, w2s_ref[...], preferred_element_type=jnp.float32)
        + b2s_ref[...])                       # (B_blk, Dh) f32, bounded log-scale
    t = (jnp.dot(hb, w2t_ref[...], preferred_element_type=jnp.float32)
         + b2t_ref[...])                      # (B_blk, Dh) f32, shift

    # f32 epilogue (v5e has no bf16 VPU/EUP); bf16 store of the transformed half.
    z2_ref[...] = (x2.astype(jnp.float32) * jnp.exp(s) + t).astype(z2_ref.dtype)

    # Per-row logdet; narrow 8-lane slab instead of a 128-lane broadcast.
    ld = jnp.sum(s, axis=-1, keepdims=True)   # (B_blk, 1)
    ld_ref[...] = jnp.broadcast_to(ld, ld_ref.shape)


@partial(jax.jit, static_argnames=("block_b",))
def normalizing_flow_forward(x_nchw, w1, b1, w2, b2, *, block_b=512):
    """x_nchw: (B, C, H, W) -> (z (B, D) bf16, logdet (B,) f32)."""
    B = x_nchw.shape[0]
    x = x_nchw.reshape(B, -1).astype(jnp.bfloat16)   # bf16 HBM activations
    D = x.shape[1]
    assert D % 256 == 0, "feature dim must split into 128-lane-aligned halves"
    Dh = D // 2
    hidden = w1.shape[1]

    # Zero-pad hidden dim to a full 128-lane MXU tile (exact: padded h columns
    # are tanh(0)=0 and hit zero rows of W2).  Weights bf16, biases f32.
    Hp = _round_up(hidden, 128)
    bf16 = jnp.bfloat16
    w1p = jnp.zeros((Dh, Hp), bf16).at[:, :hidden].set(w1.astype(bf16))
    b1p = jnp.zeros((1, Hp), jnp.float32).at[:, :hidden].set(
        b1.reshape(1, hidden).astype(jnp.float32))
    w2p = jnp.zeros((Hp, D), bf16).at[:hidden, :].set(w2.astype(bf16))
    w2s, w2t = w2p[:, :Dh], w2p[:, Dh:]
    b2r = b2.reshape(1, D).astype(jnp.float32)
    b2s, b2t = b2r[:, :Dh], b2r[:, Dh:]

    # Batch tiling (no pad in the common case).
    B_blk, B_pad = _pick_block(B, block_b)
    if B_pad != B:
        x = jnp.pad(x, ((0, B_pad - B), (0, 0)))
    grid = (B_pad // B_blk,)
    # NOTE(v7x): with 2 TensorCores keep B >= 2*B_blk so the "parallel" grid
    # spans both cores; the toy harness (B=2) necessarily has grid == 1.

    batch_spec = lambda shape: pl.BlockSpec(shape, lambda i: (i, 0))
    resident = lambda shape: pl.BlockSpec(shape, lambda i: (0, 0))

    z_pad, ld_pad = pl.pallas_call(
        _coupling_kernel,
        out_shape=(
            jax.ShapeDtypeStruct((B_pad, D), bf16),         # z (aliases x)
            jax.ShapeDtypeStruct((B_pad, 8), jnp.float32),  # logdet slab
        ),
        grid_spec=pltpu.PrefetchScalarGridSpec(
            num_scalar_prefetch=0,
            grid=grid,
            in_specs=[
                batch_spec((B_blk, D)),    # x       (streamed per batch tile)
                resident((Dh, Hp)),        # W1      (VMEM-resident)
                resident((1, Hp)),         # b1
                resident((Hp, Dh)),        # W2_s
                resident((Hp, Dh)),        # W2_t
                resident((1, Dh)),         # b2_s
                resident((1, Dh)),         # b2_t
            ],
            out_specs=[
                # Only the transformed column half (block column 1) is written;
                # the identity half keeps x's values through the HBM alias.
                pl.BlockSpec((B_blk, Dh), lambda i: (i, 1)),
                batch_spec((B_blk, 8)),
            ],
        ),
        input_output_aliases={0: 0},       # z shares x's HBM buffer
        compiler_params=pltpu.CompilerParams(
            dimension_semantics=("parallel",),
        ),
    )(x, w1p, b1p, w2s, w2t, b2s, b2t)

    z = z_pad[:B] if B_pad != B else z_pad
    ld = ld_pad[:B, 0] if B_pad != B else ld_pad[:, 0]
    return z, ld


def _reference(x_nchw, w1, b1, w2, b2):
    """Pure-JAX reference mirroring the kernel's bf16 I/O + MXU precision."""
    B = x_nchw.shape[0]
    x = x_nchw.reshape(B, -1).astype(jnp.bfloat16)
    D = x.shape[1]
    Dh = D // 2
    f32, bf16 = jnp.float32, jnp.bfloat16
    x1, x2 = x[:, :Dh], x[:, Dh:]
    h = jnp.tanh(jnp.dot(x1, w1.astype(bf16), preferred_element_type=f32)
                 + b1.reshape(1, -1).astype(f32))
    hb = h.astype(bf16)
    s = jnp.tanh(jnp.dot(hb, w2[:, :Dh].astype(bf16), preferred_element_type=f32)
                 + b2.reshape(1, -1)[:, :Dh].astype(f32))
    t = (jnp.dot(hb, w2[:, Dh:].astype(bf16), preferred_element_type=f32)
         + b2.reshape(1, -1)[:, Dh:].astype(f32))
    z2 = x2.astype(f32) * jnp.exp(s) + t
    z = jnp.concatenate([x1.astype(f32), z2], axis=1)
    return z, jnp.sum(s, axis=-1)


if __name__ == "__main__":
    key = jax.random.PRNGKey(0)
    kx, k1, k2, k3, k4 = jax.random.split(key, 5)

    # Small shapes consistent with an NCHW image input.
    B, C, H, W = 2, 4, 16, 16
    D = C * H * W          # 1024
    hidden = 32

    x = jax.random.normal(kx, (B, C, H, W), dtype=jnp.float32)

    # Deterministic parameter init (small scale, like nn.init defaults).
    w1 = 0.02 * jax.random.normal(k1, (D // 2, hidden), dtype=jnp.float32)
    b1 = 0.02 * jax.random.normal(k2, (1, hidden), dtype=jnp.float32)
    w2 = 0.02 * jax.random.normal(k3, (hidden, D), dtype=jnp.float32)
    b2 = 0.02 * jax.random.normal(k4, (1, D), dtype=jnp.float32)

    z, logdet = normalizing_flow_forward(x, w1, b1, w2, b2)
    z = jax.block_until_ready(z)
    logdet = jax.block_until_ready(logdet)

    z_ref, ld_ref = _reference(x, w1, b1, w2, b2)
    assert z.shape == (B, D) and logdet.shape == (B,)
    assert z.dtype == jnp.bfloat16
    # z is stored in bf16 (HBM-bandwidth lever) -> compare at bf16 tolerance.
    assert jnp.allclose(z.astype(jnp.float32), z_ref, atol=2e-2, rtol=2e-2)
    assert jnp.allclose(logdet, ld_ref, atol=1e-2, rtol=1e-2)

    print("KERNEL_OK")
</pallas_src>

<mosaic_0001>
module attributes {stable_mosaic.version = 11 : i64} {
  func.func @_coupling_kernel(%arg0: i32, %arg1: memref<2x1024xbf16, #tpu.memory_space<vmem>>, %arg2: memref<512x128xbf16, #tpu.memory_space<vmem>>, %arg3: memref<1x128xf32, #tpu.memory_space<vmem>>, %arg4: memref<128x512xbf16, #tpu.memory_space<vmem>>, %arg5: memref<128x512xbf16, #tpu.memory_space<vmem>>, %arg6: memref<1x512xf32, #tpu.memory_space<vmem>>, %arg7: memref<1x512xf32, #tpu.memory_space<vmem>>, %arg8: memref<2x512xbf16, #tpu.memory_space<vmem>>, %arg9: memref<2x8xf32, #tpu.memory_space<vmem>>) attributes {dimension_semantics = [#tpu.dimension_semantics<parallel>], iteration_bounds = array<i64: 1>, scalar_prefetch = 0 : i64, scratch_operands = 0 : i64, tpu.core_type = #tpu.core_type<tc>, window_params = [{transform_indices = @transform_0, window_bounds = array<i64: 2, 1024>}, {pipeline_mode = #tpu.pipeline_mode<synchronous>, transform_indices = @transform_1, window_bounds = array<i64: 512, 128>}, {pipeline_mode = #tpu.pipeline_mode<synchronous>, transform_indices = @transform_2, window_bounds = array<i64: 1, 128>}, {pipeline_mode = #tpu.pipeline_mode<synchronous>, transform_indices = @transform_3, window_bounds = array<i64: 128, 512>}, {pipeline_mode = #tpu.pipeline_mode<synchronous>, transform_indices = @transform_4, window_bounds = array<i64: 128, 512>}, {pipeline_mode = #tpu.pipeline_mode<synchronous>, transform_indices = @transform_5, window_bounds = array<i64: 1, 512>}, {pipeline_mode = #tpu.pipeline_mode<synchronous>, transform_indices = @transform_6, window_bounds = array<i64: 1, 512>}, {transform_indices = @transform_7, window_bounds = array<i64: 2, 512>}, {transform_indices = @transform_8, window_bounds = array<i64: 2, 8>}]} {
    %c0 = arith.constant 0 : index
    %c0_0 = arith.constant 0 : index
    %0 = vector.load %arg1[%c0, %c0_0] : memref<2x1024xbf16, #tpu.memory_space<vmem>>, vector<2x512xbf16>
    %c0_1 = arith.constant 0 : index
    %c512 = arith.constant 512 : index
    %1 = vector.load %arg1[%c0_1, %c512] : memref<2x1024xbf16, #tpu.memory_space<vmem>>, vector<2x512xbf16>
    %c0_2 = arith.constant 0 : index
    %c0_3 = arith.constant 0 : index
    %2 = vector.load %arg2[%c0_2, %c0_3] : memref<512x128xbf16, #tpu.memory_space<vmem>>, vector<512x128xbf16>
    %cst = arith.constant dense<0.000000e+00> : vector<2x128xf32>
    %3 = tpu.matmul %0, %2, %cst {dimension_numbers = #tpu.dot_dimension_numbers<[1], [0], [0], [1], [0, 0, 1, 1], [], []>} : vector<2x512xbf16>, vector<512x128xbf16>, vector<2x128xf32> -> vector<2x128xf32>
    %c0_4 = arith.constant 0 : index
    %c0_5 = arith.constant 0 : index
    %4 = vector.load %arg3[%c0_4, %c0_5] : memref<1x128xf32, #tpu.memory_space<vmem>>, vector<1x128xf32>
    %5 = vector.broadcast %4 : vector<1x128xf32> to vector<2x128xf32>
    %6 = arith.addf %3, %5 : vector<2x128xf32>
    %7 = math.tanh %6 : vector<2x128xf32>
    %8 = arith.truncf %7 : vector<2x128xf32> to vector<2x128xbf16>
    %c0_6 = arith.constant 0 : index
    %c0_7 = arith.constant 0 : index
    %9 = vector.load %arg4[%c0_6, %c0_7] : memref<128x512xbf16, #tpu.memory_space<vmem>>, vector<128x512xbf16>
    %cst_8 = arith.constant dense<0.000000e+00> : vector<2x512xf32>
    %10 = tpu.matmul %8, %9, %cst_8 {dimension_numbers = #tpu.dot_dimension_numbers<[1], [0], [0], [1], [0, 0, 1, 1], [], []>} : vector<2x128xbf16>, vector<128x512xbf16>, vector<2x512xf32> -> vector<2x512xf32>
    %c0_9 = arith.constant 0 : index
    %c0_10 = arith.constant 0 : index
    %11 = vector.load %arg6[%c0_9, %c0_10] : memref<1x512xf32, #tpu.memory_space<vmem>>, vector<1x512xf32>
    %12 = vector.broadcast %11 : vector<1x512xf32> to vector<2x512xf32>
    %13 = arith.addf %10, %12 : vector<2x512xf32>
    %14 = math.tanh %13 : vector<2x512xf32>
    %c0_11 = arith.constant 0 : index
    %c0_12 = arith.constant 0 : index
    %15 = vector.load %arg5[%c0_11, %c0_12] : memref<128x512xbf16, #tpu.memory_space<vmem>>, vector<128x512xbf16>
    %cst_13 = arith.constant dense<0.000000e+00> : vector<2x512xf32>
    %16 = tpu.matmul %8, %15, %cst_13 {dimension_numbers = #tpu.dot_dimension_numbers<[1], [0], [0], [1], [0, 0, 1, 1], [], []>} : vector<2x128xbf16>, vector<128x512xbf16>, vector<2x512xf32> -> vector<2x512xf32>
    %c0_14 = arith.constant 0 : index
    %c0_15 = arith.constant 0 : index
    %17 = vector.load %arg7[%c0_14, %c0_15] : memref<1x512xf32, #tpu.memory_space<vmem>>, vector<1x512xf32>
    %18 = vector.broadcast %17 : vector<1x512xf32> to vector<2x512xf32>
    %19 = arith.addf %16, %18 : vector<2x512xf32>
    %20 = arith.extf %1 : vector<2x512xbf16> to vector<2x512xf32>
    %21 = math.exp %14 : vector<2x512xf32>
    %22 = arith.mulf %20, %21 : vector<2x512xf32>
    %23 = arith.addf %22, %19 : vector<2x512xf32>
    %24 = arith.truncf %23 : vector<2x512xf32> to vector<2x512xbf16>
    %c0_16 = arith.constant 0 : index
    %c0_17 = arith.constant 0 : index
    %25 = vector.load %arg8[%c0_16, %c0_17] : memref<2x512xbf16, #tpu.memory_space<vmem>>, vector<2x512xbf16>
    tpu.vector_store %arg8[%c0_16, %c0_17], %24 {strides = array<i32>} : memref<2x512xbf16, #tpu.memory_space<vmem>>, vector<2x512xbf16>,
    %cst_18 = arith.constant dense<0.000000e+00> : vector<2xf32>
    %26 = vector.multi_reduction <add>, %14, %cst_18 [1] : vector<2x512xf32> to vector<2xf32>
    %27 = vector.shape_cast %26 : vector<2xf32> to vector<2x1xf32>
    %28 = vector.shape_cast %27 : vector<2x1xf32> to vector<2x1xf32>
    %29 = vector.broadcast %28 : vector<2x1xf32> to vector<2x8xf32>
    %c0_19 = arith.constant 0 : index
    %c0_20 = arith.constant 0 : index
    %30 = vector.load %arg9[%c0_19, %c0_20] : memref<2x8xf32, #tpu.memory_space<vmem>>, vector<2x8xf32>
    tpu.vector_store %arg9[%c0_19, %c0_20], %29 {strides = array<i32>} : memref<2x8xf32, #tpu.memory_space<vmem>>, vector<2x8xf32>,
    return
  }
  func.func @transform_0(%arg0: i32) -> (i32, i32) {
    %c0_i32 = arith.constant 0 : i32
    %c0_i32_0 = arith.constant 0 : i32
    return %arg0, %c0_i32 : i32, i32
  }
  func.func @transform_1(%arg0: i32) -> (i32, i32) {
    %c0_i32 = arith.constant 0 : i32
    %c0_i32_0 = arith.constant 0 : i32
    %c0_i32_1 = arith.constant 0 : i32
    return %c0_i32, %c0_i32_0 : i32, i32
  }
  func.func @transform_2(%arg0: i32) -> (i32, i32) {
    %c0_i32 = arith.constant 0 : i32
    %c0_i32_0 = arith.constant 0 : i32
    %c0_i32_1 = arith.constant 0 : i32
    return %c0_i32, %c0_i32_0 : i32, i32
  }
  func.func @transform_3(%arg0: i32) -> (i32, i32) {
    %c0_i32 = arith.constant 0 : i32
    %c0_i32_0 = arith.constant 0 : i32
    %c0_i32_1 = arith.constant 0 : i32
    return %c0_i32, %c0_i32_0 : i32, i32
  }
  func.func @transform_4(%arg0: i32) -> (i32, i32) {
    %c0_i32 = arith.constant 0 : i32
    %c0_i32_0 = arith.constant 0 : i32
    %c0_i32_1 = arith.constant 0 : i32
    return %c0_i32, %c0_i32_0 : i32, i32
  }
  func.func @transform_5(%arg0: i32) -> (i32, i32) {
    %c0_i32 = arith.constant 0 : i32
    %c0_i32_0 = arith.constant 0 : i32
    %c0_i32_1 = arith.constant 0 : i32
    return %c0_i32, %c0_i32_0 : i32, i32
  }
  func.func @transform_6(%arg0: i32) -> (i32, i32) {
    %c0_i32 = arith.constant 0 : i32
    %c0_i32_0 = arith.constant 0 : i32
    %c0_i32_1 = arith.constant 0 : i32
    return %c0_i32, %c0_i32_0 : i32, i32
  }
  func.func @transform_7(%arg0: i32) -> (i32, i32) {
    %c1_i32 = arith.constant 1 : i32
    %c0_i32 = arith.constant 0 : i32
    return %arg0, %c1_i32 : i32, i32
  }
  func.func @transform_8(%arg0: i32) -> (i32, i32) {
    %c0_i32 = arith.constant 0 : i32
    %c0_i32_0 = arith.constant 0 : i32
    return %arg0, %c0_i32 : i32, i32
  }
}

</mosaic_0001>

<llo_original>
// kernel: normalizing_flow_forward.1
$region0: #{normalizing_flow_forward.1}
  #allocation0 [shape = 'u32[]', space=smem, size = 0x4, offset = 0x4, fixed_abs, tag = 'smem constant byte address 0x4 - core index']
  #allocation1 [shape = 'u32[72,128]{1,0:T(1,128)}', space=vmem, size = 0x9000, scoped, tag = 'internal scratch']
  %s0 = inlined_call_operand.vmem [shape: bf16[2,1024], index: 0, kind: input, shape index: {}, may-alias: {0,7}]
  %s1 = inlined_call_operand.vmem [shape: bf16[512,128], index: 1, kind: input, shape index: {}]
  %s2 = inlined_call_operand.vmem [shape: f32[1,128], index: 2, kind: input, shape index: {}]
  %s3 = inlined_call_operand.vmem [shape: bf16[128,512], index: 3, kind: input, shape index: {}]
  %s4 = inlined_call_operand.vmem [shape: bf16[128,512], index: 4, kind: input, shape index: {}]
  %s5 = inlined_call_operand.vmem [shape: f32[1,512], index: 5, kind: input, shape index: {}]
  %s6 = inlined_call_operand.vmem [shape: f32[1,512], index: 6, kind: input, shape index: {}]
  %s7 = inlined_call_operand.vmem [shape: bf16[2,1024], index: 7, kind: output, shape index: {0}, may-alias: {0,7}]
  %s8 = inlined_call_operand.vmem [shape: f32[2,8], index: 8, kind: output, shape index: {1}]
  %9 = xla_tuple %s7, %s8
  %s10 = sld [smem:[#allocation0]]
  $region46: #{normalizing_flow_forward.1} parent=0
    _
  %s12 = ssub.s32 1, %s10
  %s13 = scalar_select 0, %s12, %s10
  // Predicated region
  $region2: #{normalizing_flow_forward.1} parent=0 // pred_check
    _
  $region3: #{normalizing_flow_forward.1} parent=0 // pred_check_branch
    %15 = sbr.rel (0) target = $region5
  $region4: #{normalizing_flow_forward.1} parent=0 // pred_region
    _
  $region5: #{normalizing_flow_forward.1} parent=0 // pred_fallthru
    _
  // Predicated region
  $region6: #{normalizing_flow_forward.1} parent=0 // pred_check
    _
  $region7: #{normalizing_flow_forward.1} parent=0 // pred_check_branch
    %17 = sbr.rel (0) target = $region9
  $region8: #{normalizing_flow_forward.1} parent=0 // pred_region
    _
  $region9: #{normalizing_flow_forward.1} parent=0 // pred_fallthru
    _
  // Predicated region
  $region10: #{normalizing_flow_forward.1} parent=0 // pred_check
    _
  $region11: #{normalizing_flow_forward.1} parent=0 // pred_check_branch
    %19 = sbr.rel (0) target = $region13
  $region12: #{normalizing_flow_forward.1} parent=0 // pred_region
    _
  $region13: #{normalizing_flow_forward.1} parent=0 // pred_fallthru
    _
  // Predicated region
  $region14: #{normalizing_flow_forward.1} parent=0 // pred_check
    _
  $region15: #{normalizing_flow_forward.1} parent=0 // pred_check_branch
    %21 = sbr.rel (0) target = $region17
  $region16: #{normalizing_flow_forward.1} parent=0 // pred_region
    _
  $region17: #{normalizing_flow_forward.1} parent=0 // pred_fallthru
    _
  // Predicated region
  $region18: #{normalizing_flow_forward.1} parent=0 // pred_check
    _
  $region19: #{normalizing_flow_forward.1} parent=0 // pred_check_branch
    %23 = sbr.rel (0) target = $region21
  $region20: #{normalizing_flow_forward.1} parent=0 // pred_region
    _
  $region21: #{normalizing_flow_forward.1} parent=0 // pred_fallthru
    _
  // Predicated region
  $region22: #{normalizing_flow_forward.1} parent=0 // pred_check
    _
  $region23: #{normalizing_flow_forward.1} parent=0 // pred_check_branch
    %25 = sbr.rel (0) target = $region25
  $region24: #{normalizing_flow_forward.1} parent=0 // pred_region
    _
  $region25: #{normalizing_flow_forward.1} parent=0 // pred_fallthru
    _
  // Predicated region
  $region26: #{normalizing_flow_forward.1} parent=0 // pred_check
    _
  $region27: #{normalizing_flow_forward.1} parent=0 // pred_check_branch
    %27 = sbr.rel (0) target = $region29
  $region28: #{normalizing_flow_forward.1} parent=0 // pred_region
    _
  $region29: #{normalizing_flow_forward.1} parent=0 // pred_fallthru
    _
  %s28 = scalar_lea.vmem %s7, 4
  %s29 = scalar_lea.vmem %s7, 4
  %v30 = vld [vmem:[%s0] sm:$0xf]
  %v31 = vld [vmem:[%s0 + $0x4] sm:$0xf]
  %v32 = vld [vmem:[%s1] sm:$0xf]
  %v33 = vld [vmem:[%s1 + $0x4] sm:$0xf]
  %v34 = vld [vmem:[%s1 + $0x8] sm:$0xf]
  %v35 = vld [vmem:[%s1 + $0xc] sm:$0xf]
  %v36 = vld [vmem:[%s1 + $0x10] sm:$0xf]
  %v37 = vld [vmem:[%s1 + $0x14] sm:$0xf]
  %v38 = vld [vmem:[%s1 + $0x18] sm:$0xf]
  %v39 = vld [vmem:[%s1 + $0x1c] sm:$0xf]
  %v40 = vld [vmem:[%s1 + $0x20] sm:$0xf]
  %v41 = vld [vmem:[%s1 + $0x24] sm:$0xf]
  %v42 = vld [vmem:[%s1 + $0x28] sm:$0xf]
  %v43 = vld [vmem:[%s1 + $0x2c] sm:$0xf]
  %v44 = vld [vmem:[%s1 + $0x30] sm:$0xf]
  %v45 = vld [vmem:[%s1 + $0x34] sm:$0xf]
  %v46 = vld [vmem:[%s1 + $0x38] sm:$0xf]
  %v47 = vld [vmem:[%s1 + $0x3c] sm:$0xf]
  %v48 = vld [vmem:[%s1 + $0x40] sm:$0xf]
  %v49 = vld [vmem:[%s1 + $0x44] sm:$0xf]
  %v50 = vld [vmem:[%s1 + $0x48] sm:$0xf]
  %v51 = vld [vmem:[%s1 + $0x4c] sm:$0xf]
  %v52 = vld [vmem:[%s1 + $0x50] sm:$0xf]
  %v53 = vld [vmem:[%s1 + $0x54] sm:$0xf]
  %v54 = vld [vmem:[%s1 + $0x58] sm:$0xf]
  %v55 = vld [vmem:[%s1 + $0x5c] sm:$0xf]
  %v56 = vld [vmem:[%s1 + $0x60] sm:$0xf]
  %v57 = vld [vmem:[%s1 + $0x64] sm:$0xf]
  %v58 = vld [vmem:[%s1 + $0x68] sm:$0xf]
  %v59 = vld [vmem:[%s1 + $0x6c] sm:$0xf]
  %v60 = vld [vmem:[%s1 + $0x70] sm:$0xf]
  %v61 = vld [vmem:[%s1 + $0x74] sm:$0xf]
  %v62 = vld [vmem:[%s1 + $0x78] sm:$0xf]
  %v63 = vld [vmem:[%s1 + $0x7c] sm:$0xf]
  %v64 = vld [vmem:[%s1 + $0x80] sm:$0xf]
  %v65 = vld [vmem:[%s1 + $0x84] sm:$0xf]
  %v66 = vld [vmem:[%s1 + $0x88] sm:$0xf]
  %v67 = vld [vmem:[%s1 + $0x8c] sm:$0xf]
  %v68 = vld [vmem:[%s1 + $0x90] sm:$0xf]
  %v69 = vld [vmem:[%s1 + $0x94] sm:$0xf]
  %v70 = vld [vmem:[%s1 + $0x98] sm:$0xf]
  %v71 = vld [vmem:[%s1 + $0x9c] sm:$0xf]
  %v72 = vld [vmem:[%s1 + $0xa0] sm:$0xf]
  %v73 = vld [vmem:[%s1 + $0xa4] sm:$0xf]
  %v74 = vld [vmem:[%s1 + $0xa8] sm:$0xf]
  %v75 = vld [vmem:[%s1 + $0xac] sm:$0xf]
  %v76 = vld [vmem:[%s1 + $0xb0] sm:$0xf]
  %v77 = vld [vmem:[%s1 + $0xb4] sm:$0xf]
  %v78 = vld [vmem:[%s1 + $0xb8] sm:$0xf]
  %v79 = vld [vmem:[%s1 + $0xbc] sm:$0xf]
  %v80 = vld [vmem:[%s1 + $0xc0] sm:$0xf]
  %v81 = vld [vmem:[%s1 + $0xc4] sm:$0xf]
  %v82 = vld [vmem:[%s1 + $0xc8] sm:$0xf]
  %v83 = vld [vmem:[%s1 + $0xcc] sm:$0xf]
  %v84 = vld [vmem:[%s1 + $0xd0] sm:$0xf]
  %v85 = vld [vmem:[%s1 + $0xd4] sm:$0xf]
  %v86 = vld [vmem:[%s1 + $0xd8] sm:$0xf]
  %v87 = vld [vmem:[%s1 + $0xdc] sm:$0xf]
  %v88 = vld [vmem:[%s1 + $0xe0] sm:$0xf]
  %v89 = vld [vmem:[%s1 + $0xe4] sm:$0xf]
  %v90 = vld [vmem:[%s1 + $0xe8] sm:$0xf]
  %v91 = vld [vmem:[%s1 + $0xec] sm:$0xf]
  %v92 = vld [vmem:[%s1 + $0xf0] sm:$0xf]
  %v93 = vld [vmem:[%s1 + $0xf4] sm:$0xf]
  %v94 = vld [vmem:[%s1 + $0xf8] sm:$0xf]
  %v95 = vld [vmem:[%s1 + $0xfc] sm:$0xf]
  %v96 = vld [vmem:[%s2] sm:$0x1]
  %v98 = vperm.slane %v96, 0
  %101 = vst [vmem:[#allocation1] ss:$9 sm:$0xff] %v30
  %v102 = vld [vmem:[#allocation1] sm:$0xff]
  %v103 = vld [vmem:[#allocation1 + $0x9] sm:$0xff]
  %v104 = vld [vmem:[#allocation1 + $0x12] sm:$0xff]
  %v105 = vld [vmem:[#allocation1 + $0x1b] sm:$0xff]
  %v174 = vunpack.c.l.b16 %v32
  %v175 = vunpack.c.l.b16 %v33
  %v176 = vunpack.c.l.b16 %v34
  %v177 = vunpack.c.l.b16 %v35
  %v178 = vunpack.c.l.b16 %v36
  %v179 = vunpack.c.l.b16 %v37
  %v180 = vunpack.c.l.b16 %v38
  %v181 = vunpack.c.l.b16 %v39
  %v182 = vunpack.c.l.b16 %v40
  %v183 = vunpack.c.l.b16 %v41
  %v184 = vunpack.c.l.b16 %v42
  %v185 = vunpack.c.l.b16 %v43
  %v186 = vunpack.c.l.b16 %v44
  %v187 = vunpack.c.l.b16 %v45
  %v188 = vunpack.c.l.b16 %v46
  %v189 = vunpack.c.l.b16 %v47
  %v190 = vunpack.c.l.b16 %v48
  %v191 = vunpack.c.l.b16 %v49
  %v192 = vunpack.c.l.b16 %v50
  %v193 = vunpack.c.l.b16 %v51
  %v194 = vunpack.c.l.b16 %v52
  %v195 = vunpack.c.l.b16 %v53
  %v196 = vunpack.c.l.b16 %v54
  %v197 = vunpack.c.l.b16 %v55
  %v198 = vunpack.c.l.b16 %v56
  %v199 = vunpack.c.l.b16 %v57
  %v200 = vunpack.c.l.b16 %v58
  %v201 = vunpack.c.l.b16 %v59
  %v202 = vunpack.c.l.b16 %v60
  %v203 = vunpack.c.l.b16 %v61
  %v204 = vunpack.c.l.b16 %v62
  %v205 = vunpack.c.l.b16 %v63
  %v206 = vunpack.c.l.b16 %v64
  %v207 = vunpack.c.l.b16 %v65
  %v208 = vunpack.c.l.b16 %v66
  %v209 = vunpack.c.l.b16 %v67
  %v210 = vunpack.c.l.b16 %v68
  %v211 = vunpack.c.l.b16 %v69
  %v212 = vunpack.c.l.b16 %v70
  %v213 = vunpack.c.l.b16 %v71
  %v214 = vunpack.c.l.b16 %v72
  %v215 = vunpack.c.l.b16 %v73
  %v216 = vunpack.c.l.b16 %v74
  %v217 = vunpack.c.l.b16 %v75
  %v218 = vunpack.c.l.b16 %v76
  %v219 = vunpack.c.l.b16 %v77
  %v220 = vunpack.c.l.b16 %v78
  %v221 = vunpack.c.l.b16 %v79
  %v222 = vunpack.c.l.b16 %v80
  %v223 = vunpack.c.l.b16 %v81
  %v224 = vunpack.c.l.b16 %v82
  %v225 = vunpack.c.l.b16 %v83
  %v226 = vunpack.c.l.b16 %v84
  %v227 = vunpack.c.l.b16 %v85
  %v228 = vunpack.c.l.b16 %v86
  %v229 = vunpack.c.l.b16 %v87
  %v230 = vunpack.c.l.b16 %v88
  %v231 = vunpack.c.l.b16 %v89
  %v232 = vunpack.c.l.b16 %v90
  %v233 = vunpack.c.l.b16 %v91
  %v234 = vunpack.c.l.b16 %v92
  %v235 = vunpack.c.l.b16 %v93
  %v236 = vunpack.c.l.b16 %v94
  %v237 = vunpack.c.l.b16 %v95
  %v238 = vpack.c.b16 %v175, %v174
  %v239 = vpack.c.b16 %v177, %v176
  %v240 = vpack.c.b16 %v179, %v178
  %v241 = vpack.c.b16 %v181, %v180
  %v242 = vpack.c.b16 %v183, %v182
  %v243 = vpack.c.b16 %v185, %v184
  %v244 = vpack.c.b16 %v187, %v186
  %v245 = vpack.c.b16 %v189, %v188
  %v246 = vpack.c.b16 %v191, %v190
  %v247 = vpack.c.b16 %v193, %v192
  %v248 = vpack.c.b16 %v195, %v194
  %v249 = vpack.c.b16 %v197, %v196
  %v250 = vpack.c.b16 %v199, %v198
  %v251 = vpack.c.b16 %v201, %v200
  %v252 = vpack.c.b16 %v203, %v202
  %v253 = vpack.c.b16 %v205, %v204
  %v254 = vpack.c.b16 %v207, %v206
  %v255 = vpack.c.b16 %v209, %v208
  %v256 = vpack.c.b16 %v211, %v210
  %v257 = vpack.c.b16 %v213, %v212
  %v258 = vpack.c.b16 %v215, %v214
  %v259 = vpack.c.b16 %v217, %v216
  %v260 = vpack.c.b16 %v219, %v218
  %v261 = vpack.c.b16 %v221, %v220
  %v262 = vpack.c.b16 %v223, %v222
  %v263 = vpack.c.b16 %v225, %v224
  %v264 = vpack.c.b16 %v227, %v226
  %v265 = vpack.c.b16 %v229, %v228
  %v266 = vpack.c.b16 %v231, %v230
  %v267 = vpack.c.b16 %v233, %v232
  %v268 = vpack.c.b16 %v235, %v234
  %v269 = vpack.c.b16 %v237, %v236
  %302 = vmatpush.bf16.msra.mxu0 %v245
  %303 = vmatpush.bf16.msra.mxu0 %v244
  %304 = vmatpush.bf16.msra.mxu0 %v243
  %305 = vmatpush.bf16.msra.mxu0 %v242
  %306 = vmatpush.bf16.msra.mxu0 %v241
  %307 = vmatpush.bf16.msra.mxu0 %v240
  %308 = vmatpush.bf16.msra.mxu0 %v239
  %309 = vmatpush.bf16.msra.mxu0 %v238
  %310 = vmatmul.bf16.gmra.mxu0 %v102
  %v311 = vpop.f32.mrf.mxu0
  %v312 = vadd.f32 %v98, %v311
  %v313 = vpop.f32.mrf.mxu0
  %314 = vdwg.mxu0
  %315 = vmatpush.bf16.msra.mxu0 %v253
  %316 = vmatpush.bf16.msra.mxu0 %v252
  %317 = vmatpush.bf16.msra.mxu0 %v251
  %318 = vmatpush.bf16.msra.mxu0 %v250
  %319 = vmatpush.bf16.msra.mxu0 %v249
  %320 = vmatpush.bf16.msra.mxu0 %v248
  %321 = vmatpush.bf16.msra.mxu0 %v247
  %322 = vmatpush.bf16.msra.mxu0 %v246
  %323 = vmatmul.bf16.gmra.mxu0 %v103
  %v324 = vpop.f32.mrf.mxu0
  %v325 = vadd.f32 %v312, %v324
  %v326 = vpop.f32.mrf.mxu0
  %327 = vdwg.mxu0
  %328 = vmatpush.bf16.msra.mxu0 %v261
  %329 = vmatpush.bf16.msra.mxu0 %v260
  %330 = vmatpush.bf16.msra.mxu0 %v259
  %331 = vmatpush.bf16.msra.mxu0 %v258
  %332 = vmatpush.bf16.msra.mxu0 %v257
  %333 = vmatpush.bf16.msra.mxu0 %v256
  %334 = vmatpush.bf16.msra.mxu0 %v255
  %335 = vmatpush.bf16.msra.mxu0 %v254
  %336 = vmatmul.bf16.gmra.mxu0 %v104
  %v337 = vpop.f32.mrf.mxu0
  %v338 = vadd.f32 %v325, %v337
  %v339 = vpop.f32.mrf.mxu0
  %340 = vdwg.mxu0
  %341 = vmatpush.bf16.msra.mxu0 %v269
  %342 = vmatpush.bf16.msra.mxu0 %v268
  %343 = vmatpush.bf16.msra.mxu0 %v267
  %344 = vmatpush.bf16.msra.mxu0 %v266
  %345 = vmatpush.bf16.msra.mxu0 %v265
  %346 = vmatpush.bf16.msra.mxu0 %v264
  %347 = vmatpush.bf16.msra.mxu0 %v263
  %348 = vmatpush.bf16.msra.mxu0 %v262
  %349 = vmatmul.bf16.gmra.mxu0 %v105
  %v350 = vpop.f32.mrf.mxu0
  %v351 = vadd.f32 %v338, %v350
  %v352 = vpop.f32.mrf.mxu0
  %353 = vdwg.mxu0
  %v354 = vtanh.pop %v351
  %v355 = vpack.c.bf16 %v354, %v354
  %v356 = vld [vmem:[%s3] sm:$0xff]
  %v357 = vld [vmem:[%s3 + $0x8] sm:$0xff]
  %v358 = vld [vmem:[%s3 + $0x10] sm:$0xff]
  %v359 = vld [vmem:[%s3 + $0x18] sm:$0xff]
  %v360 = vld [vmem:[%s3 + $0x20] sm:$0xff]
  %v361 = vld [vmem:[%s3 + $0x28] sm:$0xff]
  %v362 = vld [vmem:[%s3 + $0x30] sm:$0xff]
  %v363 = vld [vmem:[%s3 + $0x38] sm:$0xff]
  %v364 = vld [vmem:[%s3 + $0x40] sm:$0xff]
  %v365 = vld [vmem:[%s3 + $0x48] sm:$0xff]
  %v366 = vld [vmem:[%s3 + $0x50] sm:$0xff]
  %v367 = vld [vmem:[%s3 + $0x58] sm:$0xff]
  %v368 = vld [vmem:[%s3 + $0x60] sm:$0xff]
  %v369 = vld [vmem:[%s3 + $0x68] sm:$0xff]
  %v370 = vld [vmem:[%s3 + $0x70] sm:$0xff]
  %v371 = vld [vmem:[%s3 + $0x78] sm:$0xff]
  %v372 = vld [vmem:[%s3 + $0x80] sm:$0xff]
  %v373 = vld [vmem:[%s3 + $0x88] sm:$0xff]
  %v374 = vld [vmem:[%s3 + $0x90] sm:$0xff]
  %v375 = vld [vmem:[%s3 + $0x98] sm:$0xff]
  %v376 = vld [vmem:[%s3 + $0xa0] sm:$0xff]
  %v377 = vld [vmem:[%s3 + $0xa8] sm:$0xff]
  %v378 = vld [vmem:[%s3 + $0xb0] sm:$0xff]
  %v379 = vld [vmem:[%s3 + $0xb8] sm:$0xff]
  %v380 = vld [vmem:[%s3 + $0xc0] sm:$0xff]
  %v381 = vld [vmem:[%s3 + $0xc8] sm:$0xff]
  %v382 = vld [vmem:[%s3 + $0xd0] sm:$0xff]
  %v383 = vld [vmem:[%s3 + $0xd8] sm:$0xff]
  %v384 = vld [vmem:[%s3 + $0xe0] sm:$0xff]
  %v385 = vld [vmem:[%s3 + $0xe8] sm:$0xff]
  %v386 = vld [vmem:[%s3 + $0xf0] sm:$0xff]
  %v387 = vld [vmem:[%s3 + $0xf8] sm:$0xff]
  %v388 = vld [vmem:[%s5] sm:$0xf]
  %v390 = vperm.slane %v388, 0
  %v391 = vperm.slane %v388, 1
  %v392 = vperm.slane %v388, 2
  %v393 = vperm.slane %v388, 3
  %v430 = vunpack.c.l.b16 %v356
  %v431 = vunpack.c.h.b16 %v356
  %v432 = vunpack.c.l.b16 %v357
  %v433 = vunpack.c.h.b16 %v357
  %v434 = vunpack.c.l.b16 %v358
  %v435 = vunpack.c.h.b16 %v358
  %v436 = vunpack.c.l.b16 %v359
  %v437 = vunpack.c.h.b16 %v359
  %v438 = vunpack.c.l.b16 %v360
  %v439 = vunpack.c.h.b16 %v360
  %v440 = vunpack.c.l.b16 %v361
  %v441 = vunpack.c.h.b16 %v361
  %v442 = vunpack.c.l.b16 %v362
  %v443 = vunpack.c.h.b16 %v362
  %v444 = vunpack.c.l.b16 %v363
  %v445 = vunpack.c.h.b16 %v363
  %v446 = vunpack.c.l.b16 %v364
  %v447 = vunpack.c.h.b16 %v364
  %v448 = vunpack.c.l.b16 %v365
  %v449 = vunpack.c.h.b16 %v365
  %v450 = vunpack.c.l.b16 %v366
  %v451 = vunpack.c.h.b16 %v366
  %v452 = vunpack.c.l.b16 %v367
  %v453 = vunpack.c.h.b16 %v367
  %v454 = vunpack.c.l.b16 %v368
  %v455 = vunpack.c.h.b16 %v368
  %v456 = vunpack.c.l.b16 %v369
  %v457 = vunpack.c.h.b16 %v369
  %v458 = vunpack.c.l.b16 %v370
  %v459 = vunpack.c.h.b16 %v370
  %v460 = vunpack.c.l.b16 %v371
  %v461 = vunpack.c.h.b16 %v371
  %v462 = vunpack.c.l.b16 %v372
  %v463 = vunpack.c.h.b16 %v372
  %v464 = vunpack.c.l.b16 %v373
  %v465 = vunpack.c.h.b16 %v373
  %v466 = vunpack.c.l.b16 %v374
  %v467 = vunpack.c.h.b16 %v374
  %v468 = vunpack.c.l.b16 %v375
  %v469 = vunpack.c.h.b16 %v375
  %v470 = vunpack.c.l.b16 %v376
  %v471 = vunpack.c.h.b16 %v376
  %v472 = vunpack.c.l.b16 %v377
  %v473 = vunpack.c.h.b16 %v377
  %v474 = vunpack.c.l.b16 %v378
  %v475 = vunpack.c.h.b16 %v378
  %v476 = vunpack.c.l.b16 %v379
  %v477 = vunpack.c.h.b16 %v379
  %v478 = vunpack.c.l.b16 %v380
  %v479 = vunpack.c.h.b16 %v380
  %v480 = vunpack.c.l.b16 %v381
  %v481 = vunpack.c.h.b16 %v381
  %v482 = vunpack.c.l.b16 %v382
  %v483 = vunpack.c.h.b16 %v382
  %v484 = vunpack.c.l.b16 %v383
  %v485 = vunpack.c.h.b16 %v383
  %v486 = vunpack.c.l.b16 %v384
  %v487 = vunpack.c.h.b16 %v384
  %v488 = vunpack.c.l.b16 %v385
  %v489 = vunpack.c.h.b16 %v385
  %v490 = vunpack.c.l.b16 %v386
  %v491 = vunpack.c.h.b16 %v386
  %v492 = vunpack.c.l.b16 %v387
  %v493 = vunpack.c.h.b16 %v387
  %v494 = vpack.c.b16 %v434, %v430
  %v495 = vpack.c.b16 %v435, %v431
  %v496 = vpack.c.b16 %v436, %v432
  %v497 = vpack.c.b16 %v437, %v433
  %v498 = vpack.c.b16 %v442, %v438
  %v499 = vpack.c.b16 %v443, %v439
  %v500 = vpack.c.b16 %v444, %v440
  %v501 = vpack.c.b16 %v445, %v441
  %v502 = vpack.c.b16 %v450, %v446
  %v503 = vpack.c.b16 %v451, %v447
  %v504 = vpack.c.b16 %v452, %v448
  %v505 = vpack.c.b16 %v453, %v449
  %v506 = vpack.c.b16 %v458, %v454
  %v507 = vpack.c.b16 %v459, %v455
  %v508 = vpack.c.b16 %v460, %v456
  %v509 = vpack.c.b16 %v461, %v457
  %v510 = vpack.c.b16 %v466, %v462
  %v511 = vpack.c.b16 %v467, %v463
  %v512 = vpack.c.b16 %v468, %v464
  %v513 = vpack.c.b16 %v469, %v465
  %v514 = vpack.c.b16 %v474, %v470
  %v515 = vpack.c.b16 %v475, %v471
  %v516 = vpack.c.b16 %v476, %v472
  %v517 = vpack.c.b16 %v477, %v473
  %v518 = vpack.c.b16 %v482, %v478
  %v519 = vpack.c.b16 %v483, %v479
  %v520 = vpack.c.b16 %v484, %v480
  %v521 = vpack.c.b16 %v485, %v481
  %v522 = vpack.c.b16 %v490, %v486
  %v523 = vpack.c.b16 %v491, %v487
  %v524 = vpack.c.b16 %v492, %v488
  %v525 = vpack.c.b16 %v493, %v489
  %558 = vmatpush.bf16.msra.mxu0 %v522
  %559 = vmatpush.bf16.msra.mxu0 %v518
  %560 = vmatpush.bf16.msra.mxu0 %v514
  %561 = vmatpush.bf16.msra.mxu0 %v510
  %562 = vmatpush.bf16.msra.mxu0 %v506
  %563 = vmatpush.bf16.msra.mxu0 %v502
  %564 = vmatpush.bf16.msra.mxu0 %v498
  %565 = vmatpush.bf16.msra.mxu0 %v494
  %566 = vmatmul.bf16.gmra.mxu0 %v355
  %v567 = vpop.f32.mrf.mxu0
  %v568 = vadd.f32 %v390, %v567
  %v569 = vpop.f32.mrf.mxu0
  %570 = vdwg.mxu0
  %571 = vmatpush.bf16.msra.mxu0 %v523
  %572 = vmatpush.bf16.msra.mxu0 %v519
  %573 = vmatpush.bf16.msra.mxu0 %v515
  %574 = vmatpush.bf16.msra.mxu0 %v511
  %575 = vmatpush.bf16.msra.mxu0 %v507
  %576 = vmatpush.bf16.msra.mxu0 %v503
  %577 = vmatpush.bf16.msra.mxu0 %v499
  %578 = vmatpush.bf16.msra.mxu0 %v495
  %579 = vmatmul.bf16.gmra.mxu0 %v355
  %v580 = vpop.f32.mrf.mxu0
  %v581 = vadd.f32 %v391, %v580
  %v582 = vpop.f32.mrf.mxu0
  %583 = vdwg.mxu0
  %584 = vmatpush.bf16.msra.mxu0 %v524
  %585 = vmatpush.bf16.msra.mxu0 %v520
  %586 = vmatpush.bf16.msra.mxu0 %v516
  %587 = vmatpush.bf16.msra.mxu0 %v512
  %588 = vmatpush.bf16.msra.mxu0 %v508
  %589 = vmatpush.bf16.msra.mxu0 %v504
  %590 = vmatpush.bf16.msra.mxu0 %v500
  %591 = vmatpush.bf16.msra.mxu0 %v496
  %592 = vmatmul.bf16.gmra.mxu0 %v355
  %v593 = vpop.f32.mrf.mxu0
  %v594 = vadd.f32 %v392, %v593
  %v595 = vpop.f32.mrf.mxu0
  %596 = vdwg.mxu0
  %597 = vmatpush.bf16.msra.mxu0 %v525
  %598 = vmatpush.bf16.msra.mxu0 %v521
  %599 = vmatpush.bf16.msra.mxu0 %v517
  %600 = vmatpush.bf16.msra.mxu0 %v513
  %601 = vmatpush.bf16.msra.mxu0 %v509
  %602 = vmatpush.bf16.msra.mxu0 %v505
  %603 = vmatpush.bf16.msra.mxu0 %v501
  %604 = vmatpush.bf16.msra.mxu0 %v497
  %605 = vmatmul.bf16.gmra.mxu0 %v355
  %v606 = vpop.f32.mrf.mxu0
  %v607 = vadd.f32 %v393, %v606
  %v608 = vpop.f32.mrf.mxu0
  %609 = vdwg.mxu0
  %v610 = vtanh.pop %v568
  %v611 = vtanh.pop %v581
  %v612 = vtanh.pop %v594
  %v613 = vtanh.pop %v607
  %v614 = vld [vmem:[%s4] sm:$0xff]
  %v615 = vld [vmem:[%s4 + $0x8] sm:$0xff]
  %v616 = vld [vmem:[%s4 + $0x10] sm:$0xff]
  %v617 = vld [vmem:[%s4 + $0x18] sm:$0xff]
  %v618 = vld [vmem:[%s4 + $0x20] sm:$0xff]
  %v619 = vld [vmem:[%s4 + $0x28] sm:$0xff]
  %v620 = vld [vmem:[%s4 + $0x30] sm:$0xff]
  %v621 = vld [vmem:[%s4 + $0x38] sm:$0xff]
  %v622 = vld [vmem:[%s4 + $0x40] sm:$0xff]
  %v623 = vld [vmem:[%s4 + $0x48] sm:$0xff]
  %v624 = vld [vmem:[%s4 + $0x50] sm:$0xff]
  %v625 = vld [vmem:[%s4 + $0x58] sm:$0xff]
  %v626 = vld [vmem:[%s4 + $0x60] sm:$0xff]
  %v627 = vld [vmem:[%s4 + $0x68] sm:$0xff]
  %v628 = vld [vmem:[%s4 + $0x70] sm:$0xff]
  %v629 = vld [vmem:[%s4 + $0x78] sm:$0xff]
  %v630 = vld [vmem:[%s4 + $0x80] sm:$0xff]
  %v631 = vld [vmem:[%s4 + $0x88] sm:$0xff]
  %v632 = vld [vmem:[%s4 + $0x90] sm:$0xff]
  %v633 = vld [vmem:[%s4 + $0x98] sm:$0xff]
  %v634 = vld [vmem:[%s4 + $0xa0] sm:$0xff]
  %v635 = vld [vmem:[%s4 + $0xa8] sm:$0xff]
  %v636 = vld [vmem:[%s4 + $0xb0] sm:$0xff]
  %v637 = vld [vmem:[%s4 + $0xb8] sm:$0xff]
  %v638 = vld [vmem:[%s4 + $0xc0] sm:$0xff]
  %v639 = vld [vmem:[%s4 + $0xc8] sm:$0xff]
  %v640 = vld [vmem:[%s4 + $0xd0] sm:$0xff]
  %v641 = vld [vmem:[%s4 + $0xd8] sm:$0xff]
  %v642 = vld [vmem:[%s4 + $0xe0] sm:$0xff]
  %v643 = vld [vmem:[%s4 + $0xe8] sm:$0xff]
  %v644 = vld [vmem:[%s4 + $0xf0] sm:$0xff]
  %v645 = vld [vmem:[%s4 + $0xf8] sm:$0xff]
  %v646 = vld [vmem:[%s6] sm:$0xf]
  %v648 = vperm.slane %v646, 0
  %v649 = vperm.slane %v646, 1
  %v650 = vperm.slane %v646, 2
  %v651 = vperm.slane %v646, 3
  %v688 = vunpack.c.l.b16 %v614
  %v689 = vunpack.c.h.b16 %v614
  %v690 = vunpack.c.l.b16 %v615
  %v691 = vunpack.c.h.b16 %v615
  %v692 = vunpack.c.l.b16 %v616
  %v693 = vunpack.c.h.b16 %v616
  %v694 = vunpack.c.l.b16 %v617
  %v695 = vunpack.c.h.b16 %v617
  %v696 = vunpack.c.l.b16 %v618
  %v697 = vunpack.c.h.b16 %v618
  %v698 = vunpack.c.l.b16 %v619
  %v699 = vunpack.c.h.b16 %v619
  %v700 = vunpack.c.l.b16 %v620
  %v701 = vunpack.c.h.b16 %v620
  %v702 = vunpack.c.l.b16 %v621
  %v703 = vunpack.c.h.b16 %v621
  %v704 = vunpack.c.l.b16 %v622
  %v705 = vunpack.c.h.b16 %v622
  %v706 = vunpack.c.l.b16 %v623
  %v707 = vunpack.c.h.b16 %v623
  %v708 = vunpack.c.l.b16 %v624
  %v709 = vunpack.c.h.b16 %v624
  %v710 = vunpack.c.l.b16 %v625
  %v711 = vunpack.c.h.b16 %v625
  %v712 = vunpack.c.l.b16 %v626
  %v713 = vunpack.c.h.b16 %v626
  %v714 = vunpack.c.l.b16 %v627
  %v715 = vunpack.c.h.b16 %v627
  %v716 = vunpack.c.l.b16 %v628
  %v717 = vunpack.c.h.b16 %v628
  %v718 = vunpack.c.l.b16 %v629
  %v719 = vunpack.c.h.b16 %v629
  %v720 = vunpack.c.l.b16 %v630
  %v721 = vunpack.c.h.b16 %v630
  %v722 = vunpack.c.l.b16 %v631
  %v723 = vunpack.c.h.b16 %v631
  %v724 = vunpack.c.l.b16 %v632
  %v725 = vunpack.c.h.b16 %v632
  %v726 = vunpack.c.l.b16 %v633
  %v727 = vunpack.c.h.b16 %v633
  %v728 = vunpack.c.l.b16 %v634
  %v729 = vunpack.c.h.b16 %v634
  %v730 = vunpack.c.l.b16 %v635
  %v731 = vunpack.c.h.b16 %v635
  %v732 = vunpack.c.l.b16 %v636
  %v733 = vunpack.c.h.b16 %v636
  %v734 = vunpack.c.l.b16 %v637
  %v735 = vunpack.c.h.b16 %v637
  %v736 = vunpack.c.l.b16 %v638
  %v737 = vunpack.c.h.b16 %v638
  %v738 = vunpack.c.l.b16 %v639
  %v739 = vunpack.c.h.b16 %v639
  %v740 = vunpack.c.l.b16 %v640
  %v741 = vunpack.c.h.b16 %v640
  %v742 = vunpack.c.l.b16 %v641
  %v743 = vunpack.c.h.b16 %v641
  %v744 = vunpack.c.l.b16 %v642
  %v745 = vunpack.c.h.b16 %v642
  %v746 = vunpack.c.l.b16 %v643
  %v747 = vunpack.c.h.b16 %v643
  %v748 = vunpack.c.l.b16 %v644
  %v749 = vunpack.c.h.b16 %v644
  %v750 = vunpack.c.l.b16 %v645
  %v751 = vunpack.c.h.b16 %v645
  %v752 = vpack.c.b16 %v692, %v688
  %v753 = vpack.c.b16 %v693, %v689
  %v754 = vpack.c.b16 %v694, %v690
  %v755 = vpack.c.b16 %v695, %v691
  %v756 = vpack.c.b16 %v700, %v696
  %v757 = vpack.c.b16 %v701, %v697
  %v758 = vpack.c.b16 %v702, %v698
  %v759 = vpack.c.b16 %v703, %v699
  %v760 = vpack.c.b16 %v708, %v704
  %v761 = vpack.c.b16 %v709, %v705
  %v762 = vpack.c.b16 %v710, %v706
  %v763 = vpack.c.b16 %v711, %v707
  %v764 = vpack.c.b16 %v716, %v712
  %v765 = vpack.c.b16 %v717, %v713
  %v766 = vpack.c.b16 %v718, %v714
  %v767 = vpack.c.b16 %v719, %v715
  %v768 = vpack.c.b16 %v724, %v720
  %v769 = vpack.c.b16 %v725, %v721
  %v770 = vpack.c.b16 %v726, %v722
  %v771 = vpack.c.b16 %v727, %v723
  %v772 = vpack.c.b16 %v732, %v728
  %v773 = vpack.c.b16 %v733, %v729
  %v774 = vpack.c.b16 %v734, %v730
  %v775 = vpack.c.b16 %v735, %v731
  %v776 = vpack.c.b16 %v740, %v736
  %v777 = vpack.c.b16 %v741, %v737
  %v778 = vpack.c.b16 %v742, %v738
  %v779 = vpack.c.b16 %v743, %v739
  %v780 = vpack.c.b16 %v748, %v744
  %v781 = vpack.c.b16 %v749, %v745
  %v782 = vpack.c.b16 %v750, %v746
  %v783 = vpack.c.b16 %v751, %v747
  %816 = vmatpush.bf16.msra.mxu0 %v780
  %817 = vmatpush.bf16.msra.mxu0 %v776
  %818 = vmatpush.bf16.msra.mxu0 %v772
  %819 = vmatpush.bf16.msra.mxu0 %v768
  %820 = vmatpush.bf16.msra.mxu0 %v764
  %821 = vmatpush.bf16.msra.mxu0 %v760
  %822 = vmatpush.bf16.msra.mxu0 %v756
  %823 = vmatpush.bf16.msra.mxu0 %v752
  %824 = vmatmul.bf16.gmra.mxu0 %v355
  %v825 = vpop.f32.mrf.mxu0
  %v826 = vadd.f32 %v648, %v825
  %v827 = vpop.f32.mrf.mxu0
  %828 = vdwg.mxu0
  %829 = vmatpush.bf16.msra.mxu0 %v781
  %830 = vmatpush.bf16.msra.mxu0 %v777
  %831 = vmatpush.bf16.msra.mxu0 %v773
  %832 = vmatpush.bf16.msra.mxu0 %v769
  %833 = vmatpush.bf16.msra.mxu0 %v765
  %834 = vmatpush.bf16.msra.mxu0 %v761
  %835 = vmatpush.bf16.msra.mxu0 %v757
  %836 = vmatpush.bf16.msra.mxu0 %v753
  %837 = vmatmul.bf16.gmra.mxu0 %v355
  %v838 = vpop.f32.mrf.mxu0
  %v839 = vadd.f32 %v649, %v838
  %v840 = vpop.f32.mrf.mxu0
  %841 = vdwg.mxu0
  %842 = vmatpush.bf16.msra.mxu0 %v782
  %843 = vmatpush.bf16.msra.mxu0 %v778
  %844 = vmatpush.bf16.msra.mxu0 %v774
  %845 = vmatpush.bf16.msra.mxu0 %v770
  %846 = vmatpush.bf16.msra.mxu0 %v766
  %847 = vmatpush.bf16.msra.mxu0 %v762
  %848 = vmatpush.bf16.msra.mxu0 %v758
  %849 = vmatpush.bf16.msra.mxu0 %v754
  %850 = vmatmul.bf16.gmra.mxu0 %v355
  %v851 = vpop.f32.mrf.mxu0
  %v852 = vadd.f32 %v650, %v851
  %v853 = vpop.f32.mrf.mxu0
  %854 = vdwg.mxu0
  %855 = vmatpush.bf16.msra.mxu0 %v783
  %856 = vmatpush.bf16.msra.mxu0 %v779
  %857 = vmatpush.bf16.msra.mxu0 %v775
  %858 = vmatpush.bf16.msra.mxu0 %v771
  %859 = vmatpush.bf16.msra.mxu0 %v767
  %860 = vmatpush.bf16.msra.mxu0 %v763
  %861 = vmatpush.bf16.msra.mxu0 %v759
  %862 = vmatpush.bf16.msra.mxu0 %v755
  %863 = vmatmul.bf16.gmra.mxu0 %v355
  %v864 = vpop.f32.mrf.mxu0
  %v865 = vadd.f32 %v651, %v864
  %v866 = vpop.f32.mrf.mxu0
  %867 = vdwg.mxu0
  %v868 = vunpack.c.l.bf16 %v31
  %v869 = vmul.f32 %v610, 1.442695
  %v870 = vpow.pop %v869
  %v871 = vmul.f32 %v611, 1.442695
  %v872 = vpow.pop %v871
  %v873 = vmul.f32 %v612, 1.442695
  %v874 = vpow.pop %v873
  %v875 = vmul.f32 %v613, 1.442695
  %v876 = vpow.pop %v875
  %v881 = vrot.slane %v872, 6
  %v882 = vrot.slane %v874, 4
  %v883 = vrot.slane %v876, 2
  %vm884 = vcmask 1041408
  %v885 = vsel %vm884, %v870, %v881
  %vm886 = vcmask 1045508
  %v887 = vsel %vm886, %v882, %v883
  %vm888 = vcmask 1043456
  %v889 = vsel %vm888, %v885, %v887
  %v891 = vmul.f32 %v868, %v889
  %v896 = vrot.slane %v839, 6
  %v897 = vrot.slane %v852, 4
  %v898 = vrot.slane %v865, 2
  %v899 = vsel %vm884, %v826, %v896
  %v900 = vsel %vm886, %v897, %v898
  %v901 = vsel %vm888, %v899, %v900
  %v903 = vadd.f32 %v891, %v901
  %905 = vst [vmem:[#allocation1] ss:$4 sm:$0xff] %v903
  %v906 = vld.sshfl [vmem:[#allocation1] sm:$0xff pattern:$0x73625140]
  %v907 = vld.sshfl [vmem:[#allocation1 + $0x8] sm:$0xff pattern:$0x73625140]
  %v908 = vld.sshfl [vmem:[#allocation1 + $0x10] sm:$0xff pattern:$0x73625140]
  %v909 = vld.sshfl [vmem:[#allocation1 + $0x18] sm:$0xff pattern:$0x73625140]
  %v914 = vpack.c.bf16 %v907, %v906
  %v915 = vpack.c.bf16 %v909, %v908
  %v918 = vrot.slane %v914, 3
  %v919 = vrot.slane %v915, 6
  %v920 = vrot.slane %v915, 1
  %vm921 = vcmask 1040384
  %v924 = vsel %vm921, %v914, %v918
  %vm925 = vcmask 1042434
  %v928 = vsel %vm925, %v919, %v920
  %v929 = vsel %vm884, %v924, %v928
  %931 = vst [vmem:[%s29] sm:$0xf] %v929
  %v932 = vsel %vm884, %v610, 0.0
  %v933 = vsel %vm884, %v611, 0.0
  %v934 = vadd.f32 %v932, %v933
  %v935 = vsel %vm884, %v612, 0.0
  %v936 = vadd.f32 %v934, %v935
  %v937 = vsel %vm884, %v613, 0.0
  %v938 = vadd.f32 %v936, %v937
  %939 = vadd.xlane.f32.xlu0 %v938
  %v940 = vpop.xlane.xlu0 %939
  %vm941 = vcmask 58368
  %942 = vst.msk [vmem:[%s8] sm:$0x3] %vm941, %v940
  %s943 = scalar_lea.vmem %s7, 4
  // Predicated region
  $region30: #{normalizing_flow_forward.1} parent=0 // pred_check
    _
  $region31: #{normalizing_flow_forward.1} parent=0 // pred_check_branch
    %945 = sbr.rel (0) target = $region33
  $region32: #{normalizing_flow_forward.1} parent=0 // pred_region
    _
  $region33: #{normalizing_flow_forward.1} parent=0 // pred_fallthru
    _
  // Predicated region
  $region34: #{normalizing_flow_forward.1} parent=0 // pred_check
    _
  $region35: #{normalizing_flow_forward.1} parent=0 // pred_check_branch
    %947 = sbr.rel (0) target = $region37
  $region36: #{normalizing_flow_forward.1} parent=0 // pred_region
    _
  $region37: #{normalizing_flow_forward.1} parent=0 // pred_fallthru
    _
  // Predicated region
  $region38: #{normalizing_flow_forward.1} parent=0 // pred_check
    _
  $region39: #{normalizing_flow_forward.1} parent=0 // pred_check_branch
    %949 = sbr.rel (0) target = $region41
  $region40: #{normalizing_flow_forward.1} parent=0 // pred_region
    %s950 = scalar_lea.vmem %s7, 4
  $region41: #{normalizing_flow_forward.1} parent=0 // pred_fallthru
    _
  // Predicated region
  $region42: #{normalizing_flow_forward.1} parent=0 // pred_check
    _
  $region43: #{normalizing_flow_forward.1} parent=0 // pred_check_branch
    %952 = sbr.rel (0) target = $region45
  $region44: #{normalizing_flow_forward.1} parent=0 // pred_region
    _
  $region45: #{normalizing_flow_forward.1} parent=0 // pred_fallthru
    _

</llo_original>
